<compile_context>
chip_gen: v5e
topology: v5e:2x2
jax: 0.10.0
libtpu: 0.0.40
codegen_flags: <defaults>
</compile_context>

<pallas_src>
import functools

import jax
import jax.numpy as jnp
from jax.experimental import pallas as pl
from jax.experimental.pallas import tpu as pltpu


def _pinn_kernel(x_ref, t_ref, vec_ref, w_mid_ref, b_mid_ref, b_out_ref, o_ref,
                 *, num_middle):
    # x_ref, t_ref: (1, TB).  Activations h are (H, TB): batch on lanes.
    # vec_ref: (H, 4) packed columns [w_in | x], [w_in | t], b_in, w_out.
    w_in_x = vec_ref[:, 0:1]            # (H, 1)
    w_in_t = vec_ref[:, 1:2]            # (H, 1)
    b_in = vec_ref[:, 2:3]              # (H, 1)
    w_out = vec_ref[:, 3:4]             # (H, 1)

    # First layer: pure VPU broadcast multiplies (avoids a K=2 MXU matmul).
    h = jnp.tanh(w_in_x * x_ref[...] + w_in_t * t_ref[...] + b_in)   # (H, TB)

    # num_middle is a small static constant -> unrolled static Python loop.
    # (If NM grows beyond ~4, switch to lax.fori_loop(..., unroll=True).)
    for i in range(num_middle):
        h = jnp.tanh(
            jnp.dot(w_mid_ref[i], h, preferred_element_type=jnp.float32)
            + b_mid_ref[i]
        )                                                             # (H, TB)

    # Output layer Linear(H, 1): VPU multiply + sublane (XLU) reduce instead of
    # an N=1 MXU matmul; b_out is a scalar read from SMEM.
    o_ref[...] = (jnp.sum(w_out * h, axis=0, keepdims=True)
                  + b_out_ref[0, 0])


def _choose_block_batch(n, dim_hidden, num_middle, vmem_budget=12 << 20):
    """Lane-aligned (multiple of 128) batch tile.

    Large (up to 8192) to amortize the ~0.35us per-grid-step overhead, but
    (a) capped so activations + double-buffered row tiles + weights stay under
        a conservative VMEM budget (v5e scoped default 16 MiB), and
    (b) kept to >= 2 grid steps when N > 128 so both v7x TensorCores get work.
    """
    H = dim_hidden
    # Per-column bytes: x/t/out (1,TB) row tiles (sublane-padded to 8, double-
    # buffered) + ~4 live (H, TB) f32 activation slabs in the kernel body.
    per_col = 3 * 2 * 8 * 4 + 4 * H * 4
    # Weights (assume double-buffered by the pipeline) + packed vectors.
    weights = 2 * (num_middle * H * H + num_middle * H + 4 * H) * 4
    tb_max = (vmem_budget - weights) // per_col
    tb_max = min(8192, max(128, (tb_max // 128) * 128))
    if n <= 128:
        return 128
    half = pl.cdiv(pl.cdiv(n, 2), 128) * 128   # ~N/2, lane-aligned
    return max(128, min(tb_max, half))


def pinn_forward(x, t, params, *, block_batch=None):
    """x, t: (N, 1) float32.  Returns logits (N, 1) float32."""
    w_in, b_in, w_mid, b_mid, w_out, b_out = params
    N = x.shape[0]
    H = w_in.shape[1]
    NM = w_mid.shape[0]

    if block_batch is None:
        block_batch = _choose_block_batch(N, H, NM)
    assert block_batch % 128 == 0, "block_batch must be lane-aligned (x128)"

    # Pad batch up to a multiple of the tile (padded rows are sliced off).
    n_pad = pl.cdiv(N, block_batch) * block_batch
    pad = n_pad - N
    x_row = jnp.pad(x[:, 0], (0, pad)).reshape(1, n_pad)
    t_row = jnp.pad(t[:, 0], (0, pad)).reshape(1, n_pad)

    # Transposed ("column-major activations") weight layout, prepared in JAX.
    # Pack the four (H,1) vectors into a single (H,4) operand.
    vec_pack = jnp.concatenate(
        [w_in[0:1, :].T, w_in[1:2, :].T, b_in.T, w_out], axis=1)  # (H, 4)
    w_mid_T = jnp.swapaxes(w_mid, 1, 2)     # (NM, H, H)
    b_mid_c = jnp.swapaxes(b_mid, 1, 2)     # (NM, H, 1)
    b_out_s = b_out.reshape(1, 1)           # scalar -> SMEM

    kernel = functools.partial(_pinn_kernel, num_middle=NM)

    # VMEM estimate -> explicit scoped-VMEM limit (v5e default is only 16 MiB).
    vmem_est = (3 * 2 * 8 * block_batch          # x/t/out rows, double-buffered
                + 4 * H * block_batch            # live activation slabs
                + 2 * (NM * H * H + NM * H + 4 * H)) * 4
    vmem_limit = int(min(48 << 20, max(16 << 20, 2 * vmem_est)))

    out_row = pl.pallas_call(
        kernel,
        out_shape=jax.ShapeDtypeStruct((1, n_pad), jnp.float32),
        grid_spec=pltpu.PrefetchScalarGridSpec(
            num_scalar_prefetch=0,
            grid=(n_pad // block_batch,),
            in_specs=[
                pl.BlockSpec((1, block_batch), lambda i: (0, i)),   # x row tile
                pl.BlockSpec((1, block_batch), lambda i: (0, i)),   # t row tile
                pl.BlockSpec((H, 4), lambda i: (0, 0)),             # packed vecs
                pl.BlockSpec((NM, H, H), lambda i: (0, 0, 0)),      # middle W^T
                pl.BlockSpec((NM, H, 1), lambda i: (0, 0, 0)),      # middle b
                pl.BlockSpec(memory_space=pltpu.MemorySpace.SMEM),  # b_out
            ],
            out_specs=pl.BlockSpec((1, block_batch), lambda i: (0, i)),
        ),
        compiler_params=pltpu.CompilerParams(
            dimension_semantics=("parallel",),
            vmem_limit_bytes=vmem_limit),
    )(x_row, t_row, vec_pack, w_mid_T, b_mid_c, b_out_s)

    return out_row[0, :N].reshape(N, 1)


def init_pinn_params(key, num_hidden, dim_hidden):
    """Deterministic init matching nn.Linear shapes (kept in 'x @ W' layout)."""
    num_middle = num_hidden - 1
    k = jax.random.split(key, 6)

    # uniform(-1/sqrt(fan_in), 1/sqrt(fan_in)) like torch.nn.Linear default.
    def u(kk, shape, fan_in):
        b = 1.0 / jnp.sqrt(jnp.float32(fan_in))
        return jax.random.uniform(kk, shape, jnp.float32, -b, b)

    w_in = u(k[0], (2, dim_hidden), 2)
    b_in = u(k[1], (1, dim_hidden), 2)
    w_mid = u(k[2], (num_middle, dim_hidden, dim_hidden), dim_hidden)
    b_mid = u(k[3], (num_middle, 1, dim_hidden), dim_hidden)
    w_out = u(k[4], (dim_hidden, 1), dim_hidden)
    b_out = u(k[5], (1, 1), dim_hidden)
    return (w_in, b_in, w_mid, b_mid, w_out, b_out)


def pinn_forward_ref(x, t, params):
    """Pure-JAX reference of the PyTorch forward (hard_constraint=False)."""
    w_in, b_in, w_mid, b_mid, w_out, b_out = params
    h = jnp.tanh(jnp.concatenate([x, t], axis=1) @ w_in + b_in)
    for i in range(w_mid.shape[0]):
        h = jnp.tanh(h @ w_mid[i] + b_mid[i])
    return h @ w_out + b_out


if __name__ == "__main__":
    num_hidden = 3      # -> 2 middle layers
    dim_hidden = 32

    key = jax.random.PRNGKey(0)
    kx, kt, kp = jax.random.split(key, 3)
    params = init_pinn_params(kp, num_hidden, dim_hidden)

    # Small batch: 256 points -> TB=128, 2 grid steps (v7x megacore friendly).
    N = 256
    x = jax.random.uniform(kx, (N, 1), jnp.float32)
    t = jax.random.uniform(kt, (N, 1), jnp.float32)
    out = jax.block_until_ready(pinn_forward(x, t, params))
    ref = pinn_forward_ref(x, t, params)
    assert out.shape == (N, 1)
    assert jnp.allclose(out, ref, atol=1e-5, rtol=1e-5), (
        f"max err {jnp.max(jnp.abs(out - ref))}")

    # Ragged batch (not a multiple of 128) exercising the jnp.pad path and the
    # multi-step grid with tail padding.
    N2 = 1000
    x2 = jax.random.uniform(kx, (N2, 1), jnp.float32)
    t2 = jax.random.uniform(kt, (N2, 1), jnp.float32)
    out2 = jax.block_until_ready(pinn_forward(x2, t2, params))
    ref2 = pinn_forward_ref(x2, t2, params)
    assert out2.shape == (N2, 1)
    assert jnp.allclose(out2, ref2, atol=1e-5, rtol=1e-5), (
        f"max err {jnp.max(jnp.abs(out2 - ref2))}")

    print("KERNEL_OK")
</pallas_src>

<mosaic_0001>
module attributes {stable_mosaic.version = 11 : i64} {
  func.func @_pinn_kernel(%arg0: i32, %arg1: memref<1x128xf32, #tpu.memory_space<vmem>>, %arg2: memref<1x128xf32, #tpu.memory_space<vmem>>, %arg3: memref<32x4xf32, #tpu.memory_space<vmem>>, %arg4: memref<2x32x32xf32, #tpu.memory_space<vmem>>, %arg5: memref<2x32x1xf32, #tpu.memory_space<vmem>>, %arg6: memref<1x1xf32, #tpu.memory_space<smem>>, %arg7: memref<1x128xf32, #tpu.memory_space<vmem>>) attributes {dimension_semantics = [#tpu.dimension_semantics<parallel>], iteration_bounds = array<i64: 2>, scalar_prefetch = 0 : i64, scratch_operands = 0 : i64, tpu.core_type = #tpu.core_type<tc>, window_params = [{transform_indices = @transform_0, window_bounds = array<i64: 1, 128>}, {transform_indices = @transform_1, window_bounds = array<i64: 1, 128>}, {pipeline_mode = #tpu.pipeline_mode<synchronous>, transform_indices = @transform_2, window_bounds = array<i64: 32, 4>}, {pipeline_mode = #tpu.pipeline_mode<synchronous>, transform_indices = @transform_3, window_bounds = array<i64: 2, 32, 32>}, {pipeline_mode = #tpu.pipeline_mode<synchronous>, transform_indices = @transform_4, window_bounds = array<i64: 2, 32, 1>}, {transform_indices = @transform_5, window_bounds = array<i64: 1, 1>}, {transform_indices = @transform_6, window_bounds = array<i64: 1, 128>}]} {
    %c0 = arith.constant 0 : index
    %c0_0 = arith.constant 0 : index
    %0 = vector.load %arg3[%c0, %c0_0] : memref<32x4xf32, #tpu.memory_space<vmem>>, vector<32x1xf32>
    %c0_1 = arith.constant 0 : index
    %c1 = arith.constant 1 : index
    %1 = vector.load %arg3[%c0_1, %c1] : memref<32x4xf32, #tpu.memory_space<vmem>>, vector<32x1xf32>
    %c0_2 = arith.constant 0 : index
    %c2 = arith.constant 2 : index
    %2 = vector.load %arg3[%c0_2, %c2] : memref<32x4xf32, #tpu.memory_space<vmem>>, vector<32x1xf32>
    %c0_3 = arith.constant 0 : index
    %c3 = arith.constant 3 : index
    %3 = vector.load %arg3[%c0_3, %c3] : memref<32x4xf32, #tpu.memory_space<vmem>>, vector<32x1xf32>
    %c0_4 = arith.constant 0 : index
    %c0_5 = arith.constant 0 : index
    %4 = vector.load %arg1[%c0_4, %c0_5] : memref<1x128xf32, #tpu.memory_space<vmem>>, vector<1x128xf32>
    %5 = vector.broadcast %0 : vector<32x1xf32> to vector<32x128xf32>
    %6 = vector.broadcast %4 : vector<1x128xf32> to vector<32x128xf32>
    %7 = arith.mulf %5, %6 : vector<32x128xf32>
    %c0_6 = arith.constant 0 : index
    %c0_7 = arith.constant 0 : index
    %8 = vector.load %arg2[%c0_6, %c0_7] : memref<1x128xf32, #tpu.memory_space<vmem>>, vector<1x128xf32>
    %9 = vector.broadcast %1 : vector<32x1xf32> to vector<32x128xf32>
    %10 = vector.broadcast %8 : vector<1x128xf32> to vector<32x128xf32>
    %11 = arith.mulf %9, %10 : vector<32x128xf32>
    %12 = arith.addf %7, %11 : vector<32x128xf32>
    %13 = vector.broadcast %2 : vector<32x1xf32> to vector<32x128xf32>
    %14 = arith.addf %12, %13 : vector<32x128xf32>
    %15 = math.tanh %14 : vector<32x128xf32>
    %c0_8 = arith.constant 0 : index
    %c0_9 = arith.constant 0 : index
    %c0_10 = arith.constant 0 : index
    %16 = vector.load %arg4[%c0_8, %c0_9, %c0_10] : memref<2x32x32xf32, #tpu.memory_space<vmem>>, vector<1x32x32xf32>
    %17 = vector.shape_cast %16 : vector<1x32x32xf32> to vector<32x32xf32>
    %cst = arith.constant dense<0.000000e+00> : vector<32x128xf32>
    %18 = tpu.matmul %17, %15, %cst {dimension_numbers = #tpu.dot_dimension_numbers<[1], [0], [0], [1], [0, 0, 1, 1], [], []>} : vector<32x32xf32>, vector<32x128xf32>, vector<32x128xf32> -> vector<32x128xf32>
    %c0_11 = arith.constant 0 : index
    %c0_12 = arith.constant 0 : index
    %c0_13 = arith.constant 0 : index
    %19 = vector.load %arg5[%c0_11, %c0_12, %c0_13] : memref<2x32x1xf32, #tpu.memory_space<vmem>>, vector<1x32x1xf32>
    %20 = vector.shape_cast %19 : vector<1x32x1xf32> to vector<32x1xf32>
    %21 = vector.broadcast %20 : vector<32x1xf32> to vector<32x128xf32>
    %22 = arith.addf %18, %21 : vector<32x128xf32>
    %23 = math.tanh %22 : vector<32x128xf32>
    %c1_14 = arith.constant 1 : index
    %c0_15 = arith.constant 0 : index
    %c0_16 = arith.constant 0 : index
    %24 = vector.load %arg4[%c1_14, %c0_15, %c0_16] : memref<2x32x32xf32, #tpu.memory_space<vmem>>, vector<1x32x32xf32>
    %25 = vector.shape_cast %24 : vector<1x32x32xf32> to vector<32x32xf32>
    %cst_17 = arith.constant dense<0.000000e+00> : vector<32x128xf32>
    %26 = tpu.matmul %25, %23, %cst_17 {dimension_numbers = #tpu.dot_dimension_numbers<[1], [0], [0], [1], [0, 0, 1, 1], [], []>} : vector<32x32xf32>, vector<32x128xf32>, vector<32x128xf32> -> vector<32x128xf32>
    %c1_18 = arith.constant 1 : index
    %c0_19 = arith.constant 0 : index
    %c0_20 = arith.constant 0 : index
    %27 = vector.load %arg5[%c1_18, %c0_19, %c0_20] : memref<2x32x1xf32, #tpu.memory_space<vmem>>, vector<1x32x1xf32>
    %28 = vector.shape_cast %27 : vector<1x32x1xf32> to vector<32x1xf32>
    %29 = vector.broadcast %28 : vector<32x1xf32> to vector<32x128xf32>
    %30 = arith.addf %26, %29 : vector<32x128xf32>
    %31 = math.tanh %30 : vector<32x128xf32>
    %32 = vector.broadcast %3 : vector<32x1xf32> to vector<32x128xf32>
    %33 = arith.mulf %32, %31 : vector<32x128xf32>
    %cst_21 = arith.constant dense<0.000000e+00> : vector<128xf32>
    %34 = vector.multi_reduction <add>, %33, %cst_21 [0] : vector<32x128xf32> to vector<128xf32>
    %35 = vector.shape_cast %34 : vector<128xf32> to vector<1x128xf32>
    %c0_22 = arith.constant 0 : index
    %c0_23 = arith.constant 0 : index
    %36 = memref.load %arg6[%c0_22, %c0_23] : memref<1x1xf32, #tpu.memory_space<smem>>
    %37 = vector.broadcast %36 : f32 to vector<1x128xf32>
    %38 = arith.addf %35, %37 : vector<1x128xf32>
    %c0_24 = arith.constant 0 : index
    %c0_25 = arith.constant 0 : index
    %39 = vector.load %arg7[%c0_24, %c0_25] : memref<1x128xf32, #tpu.memory_space<vmem>>, vector<1x128xf32>
    tpu.vector_store %arg7[%c0_24, %c0_25], %38 {strides = array<i32>} : memref<1x128xf32, #tpu.memory_space<vmem>>, vector<1x128xf32>,
    return
  }
  func.func @transform_0(%arg0: i32) -> (i32, i32) {
    %c0_i32 = arith.constant 0 : i32
    %c0_i32_0 = arith.constant 0 : i32
    return %c0_i32, %arg0 : i32, i32
  }
  func.func @transform_1(%arg0: i32) -> (i32, i32) {
    %c0_i32 = arith.constant 0 : i32
    %c0_i32_0 = arith.constant 0 : i32
    return %c0_i32, %arg0 : i32, i32
  }
  func.func @transform_2(%arg0: i32) -> (i32, i32) {
    %c0_i32 = arith.constant 0 : i32
    %c0_i32_0 = arith.constant 0 : i32
    %c0_i32_1 = arith.constant 0 : i32
    return %c0_i32, %c0_i32_0 : i32, i32
  }
  func.func @transform_3(%arg0: i32) -> (i32, i32, i32) {
    %c0_i32 = arith.constant 0 : i32
    %c0_i32_0 = arith.constant 0 : i32
    %c0_i32_1 = arith.constant 0 : i32
    %c0_i32_2 = arith.constant 0 : i32
    return %c0_i32, %c0_i32_0, %c0_i32_1 : i32, i32, i32
  }
  func.func @transform_4(%arg0: i32) -> (i32, i32, i32) {
    %c0_i32 = arith.constant 0 : i32
    %c0_i32_0 = arith.constant 0 : i32
    %c0_i32_1 = arith.constant 0 : i32
    %c0_i32_2 = arith.constant 0 : i32
    return %c0_i32, %c0_i32_0, %c0_i32_1 : i32, i32, i32
  }
  func.func @transform_5(%arg0: i32) -> (i32, i32) {
    %c0_i32 = arith.constant 0 : i32
    %c0_i32_0 = arith.constant 0 : i32
    %c0_i32_1 = arith.constant 0 : i32
    return %c0_i32, %c0_i32_0 : i32, i32
  }
  func.func @transform_6(%arg0: i32) -> (i32, i32) {
    %c0_i32 = arith.constant 0 : i32
    %c0_i32_0 = arith.constant 0 : i32
    return %c0_i32, %arg0 : i32, i32
  }
}

</mosaic_0001>

<llo_original>
// kernel: tpu_custom_call.1
$region0: #{tpu_custom_call.1}
  #allocation0 [shape = 'u32[]', space=smem, size = 0x4, offset = 0x4, fixed_abs, tag = 'smem constant byte address 0x4 - core index']
  #allocation1 [shape = 'u32[72,128]{1,0:T(1,128)}', space=vmem, size = 0x9000, scoped, tag = 'internal scratch']
  #allocation2 [shape = 'f32[1,1]{1,0:T(1,128)S(6)}', space=smem, size = 0x200, scoped, tag = 'scoped memory for tpu_custom_call.1']
  %s0 = inlined_call_operand.vmem [shape: f32[1,256], index: 0, kind: input, shape index: {}]
  %s1 = inlined_call_operand.vmem [shape: f32[1,256], index: 1, kind: input, shape index: {}]
  %s2 = inlined_call_operand.vmem [shape: f32[32,4], index: 2, kind: input, shape index: {}]
  %s3 = inlined_call_operand.vmem [shape: f32[2,32,32], index: 3, kind: input, shape index: {}]
  %s4 = inlined_call_operand.vmem [shape: f32[2,32,1], index: 4, kind: input, shape index: {}]
  %s5 = inlined_call_operand.<no memory space> [shape: f32[1,1], index: 5, kind: input, shape index: {}]
  %s6 = inlined_call_operand.hbm [shape: f32[1,256], index: 6, kind: output, shape index: {}]
  %s7 = sld [smem:[#allocation0]]
  $region57: #{tpu_custom_call.1} parent=0
    _
  %s9 = ssub.s32 1, %s7
  %s10 = scalar_select 0, %s9, %s7
  %11 = sst [smem:[#allocation2]] %s5
  $region1: #{tpu_custom_call.1} parent=0
    #allocation3 [shape = 'u8[1024]{0}', space=vmem, size = 0x400, scoped, tag = 'output window, operand 0']
    #allocation4 [shape = 's32[2]{0}', space=sflag, size = 0x8, scoped, tag = 'scoped memory for tpu_custom_call.1']
    %12 = vsyncpa [#allocation4], 0
    %s13 = scalar_lea.sflag [#allocation4], 1
    %14 = vsyncpa %s13, 0
    loop: start=0, step=1, limit=4
    $region2: #{tpu_custom_call.1} parent=1 // loop_pre_header
      _
    $region3: #{tpu_custom_call.1} parent=1 // loop_header
      %s16 = sphi 0, %s20
      %p17 = scmp.ge.s32.totalorder %s16, 4
      %s26 = sphi 0, %s28
      %s29 = sphi 0, %s26
      %s30 = sphi 0, %s29
      %s46 = sphi 0, %s30
      %s52 = sphi 0, %s54
      %s55 = sphi 0, %s52
      %s56 = sphi 0, %s55
      %s72 = sphi 0, %s56
      %s76 = sphi 0, %s76
      %s78 = sphi 0, %s76
      %s79 = sphi 0, %s78
      %s93 = sphi 0, %s79
      %s97 = sphi 0, %s97
      %s99 = sphi 0, %s97
      %s100 = sphi 0, %s99
      %s114 = sphi 0, %s100
      %s118 = sphi 0, %s118
      %s120 = sphi 0, %s118
      %s121 = sphi 0, %s120
      %s135 = sphi 0, %s121
      %s139 = sphi 0, %s139
      %s141 = sphi 0, %s139
      %s142 = sphi 0, %s141
      %s156 = sphi 0, %s142
      %s162 = sphi 0, %s164
      %s165 = sphi 0, %s162
      %s166 = sphi 0, %s165
      %s182 = sphi 0, %s166
    $region4: #{tpu_custom_call.1} parent=1 // loop_header_branch
      %19 = sbr.rel (%p17) target = $region8
    $region5: #{tpu_custom_call.1} parent=1 // loop_body
      %s21 = ssub.s32 %s16, 1
      %s22 = ssub.s32 %s16, 2
      %s23 = sadd.s32 %s16, 1
      %s24 = ssub.s32 %s16, %s23
      %p25 = scmp.eq.s32.totalorder %s24, 0
      %s27 = sadd.s32 %s26, 1
      %s28 = scalar_select %p25, %s26, %s27
      %p31 = pneg %p25
      %p32 = scmp.eq.s32.totalorder %s16, 1
      %p33 = por %p31, %p32
      %p34 = scmp.ne.s32.totalorder %s26, %s29
      %p35 = scmp.eq.s32.totalorder %s16, 0
      %p36 = por %p34, %p35
      %p37 = scmp.ne.s32.totalorder %s26, %s29
      %p38 = scmp.eq.s32.totalorder %s21, 1
      %p39 = por %p37, %p38
      %p40 = scmp.ne.s32.totalorder %s29, %s30
      %p41 = scmp.eq.s32.totalorder %s21, 0
      %p42 = por %p40, %p41
      %p43 = scmp.ne.s32.totalorder %s29, %s30
      %p44 = scmp.eq.s32.totalorder %s22, 1
      %p45 = por %p43, %p44
      %p47 = scmp.ne.s32.totalorder %s30, %s46
      %p48 = scmp.eq.s32.totalorder %s22, 0
      %p49 = por %p47, %p48
      %s50 = ssub.s32 %s16, %s23
      %p51 = scmp.eq.s32.totalorder %s50, 0
      %s53 = sadd.s32 %s52, 1
      %s54 = scalar_select %p51, %s52, %s53
      %p57 = pneg %p51
      %p58 = scmp.eq.s32.totalorder %s16, 1
      %p59 = por %p57, %p58
      %p60 = scmp.ne.s32.totalorder %s52, %s55
      %p61 = scmp.eq.s32.totalorder %s16, 0
      %p62 = por %p60, %p61
      %p63 = scmp.ne.s32.totalorder %s52, %s55
      %p64 = scmp.eq.s32.totalorder %s21, 1
      %p65 = por %p63, %p64
      %p66 = scmp.ne.s32.totalorder %s55, %s56
      %p67 = scmp.eq.s32.totalorder %s21, 0
      %p68 = por %p66, %p67
      %p69 = scmp.ne.s32.totalorder %s55, %s56
      %p70 = scmp.eq.s32.totalorder %s22, 1
      %p71 = por %p69, %p70
      %p73 = scmp.ne.s32.totalorder %s56, %s72
      %p74 = scmp.eq.s32.totalorder %s22, 0
      %p75 = por %p73, %p74
      %s77 = sadd.s32 %s76, 1
      %p80 = scmp.eq.s32.totalorder %s16, 1
      %p81 = scmp.ne.s32.totalorder %s76, %s78
      %p82 = scmp.eq.s32.totalorder %s16, 0
      %p83 = por %p81, %p82
      %p84 = scmp.ne.s32.totalorder %s76, %s78
      %p85 = scmp.eq.s32.totalorder %s21, 1
      %p86 = por %p84, %p85
      %p87 = scmp.ne.s32.totalorder %s78, %s79
      %p88 = scmp.eq.s32.totalorder %s21, 0
      %p89 = por %p87, %p88
      %p90 = scmp.ne.s32.totalorder %s78, %s79
      %p91 = scmp.eq.s32.totalorder %s22, 1
      %p92 = por %p90, %p91
      %p94 = scmp.ne.s32.totalorder %s79, %s93
      %p95 = scmp.eq.s32.totalorder %s22, 0
      %p96 = por %p94, %p95
      %s98 = sadd.s32 %s97, 1
      %p101 = scmp.eq.s32.totalorder %s16, 1
      %p102 = scmp.ne.s32.totalorder %s97, %s99
      %p103 = scmp.eq.s32.totalorder %s16, 0
      %p104 = por %p102, %p103
      %p105 = scmp.ne.s32.totalorder %s97, %s99
      %p106 = scmp.eq.s32.totalorder %s21, 1
      %p107 = por %p105, %p106
      %p108 = scmp.ne.s32.totalorder %s99, %s100
      %p109 = scmp.eq.s32.totalorder %s21, 0
      %p110 = por %p108, %p109
      %p111 = scmp.ne.s32.totalorder %s99, %s100
      %p112 = scmp.eq.s32.totalorder %s22, 1
      %p113 = por %p111, %p112
      %p115 = scmp.ne.s32.totalorder %s100, %s114
      %p116 = scmp.eq.s32.totalorder %s22, 0
      %p117 = por %p115, %p116
      %s119 = sadd.s32 %s118, 1
      %p122 = scmp.eq.s32.totalorder %s16, 1
      %p123 = scmp.ne.s32.totalorder %s118, %s120
      %p124 = scmp.eq.s32.totalorder %s16, 0
      %p125 = por %p123, %p124
      %p126 = scmp.ne.s32.totalorder %s118, %s120
      %p127 = scmp.eq.s32.totalorder %s21, 1
      %p128 = por %p126, %p127
      %p129 = scmp.ne.s32.totalorder %s120, %s121
      %p130 = scmp.eq.s32.totalorder %s21, 0
      %p131 = por %p129, %p130
      %p132 = scmp.ne.s32.totalorder %s120, %s121
      %p133 = scmp.eq.s32.totalorder %s22, 1
      %p134 = por %p132, %p133
      %p136 = scmp.ne.s32.totalorder %s121, %s135
      %p137 = scmp.eq.s32.totalorder %s22, 0
      %p138 = por %p136, %p137
      %s140 = sadd.s32 %s139, 1
      %p143 = scmp.eq.s32.totalorder %s16, 1
      %p144 = scmp.ne.s32.totalorder %s139, %s141
      %p145 = scmp.eq.s32.totalorder %s16, 0
      %p146 = por %p144, %p145
      %p147 = scmp.ne.s32.totalorder %s139, %s141
      %p148 = scmp.eq.s32.totalorder %s21, 1
      %p149 = por %p147, %p148
      %p150 = scmp.ne.s32.totalorder %s141, %s142
      %p151 = scmp.eq.s32.totalorder %s21, 0
      %p152 = por %p150, %p151
      %p153 = scmp.ne.s32.totalorder %s141, %s142
      %p154 = scmp.eq.s32.totalorder %s22, 1
      %p155 = por %p153, %p154
      %p157 = scmp.ne.s32.totalorder %s142, %s156
      %p158 = scmp.eq.s32.totalorder %s22, 0
      %p159 = por %p157, %p158
      %s160 = ssub.s32 %s16, %s23
      %p161 = scmp.eq.s32.totalorder %s160, 0
      %s163 = sadd.s32 %s162, 1
      %s164 = scalar_select %p161, %s162, %s163
      %p167 = pneg %p161
      %p168 = scmp.eq.s32.totalorder %s16, 1
      %p169 = por %p167, %p168
      %p170 = scmp.ne.s32.totalorder %s162, %s165
      %p171 = scmp.eq.s32.totalorder %s16, 0
      %p172 = por %p170, %p171
      %p173 = scmp.ne.s32.totalorder %s162, %s165
      %p174 = scmp.eq.s32.totalorder %s21, 1
      %p175 = por %p173, %p174
      %p176 = scmp.ne.s32.totalorder %s165, %s166
      %p177 = scmp.eq.s32.totalorder %s21, 0
      %p178 = por %p176, %p177
      %p179 = scmp.ne.s32.totalorder %s165, %s166
      %p180 = scmp.eq.s32.totalorder %s22, 1
      %p181 = por %p179, %p180
      %p183 = scmp.ne.s32.totalorder %s166, %s182
      %p184 = scmp.eq.s32.totalorder %s22, 0
      %p185 = por %p183, %p184
      %p186 = scmp.le.s32.totalorder 1, %s16
      %p187 = scmp.lt.s32.totalorder %s16, 3
      %p188 = pnand %p186, %p187
      %p189 = pneg %p188
      // Predicated region
      $region9: #{tpu_custom_call.1} parent=5 // pred_check
        _
      $region10: #{tpu_custom_call.1} parent=5 // pred_check_branch
        %191 = sbr.rel (%p188) target = $region12
      $region11: #{tpu_custom_call.1} parent=5 // pred_region
        %s192 = ssub.s32 %s16, 1
        // Predicated region
        $region13: #{tpu_custom_call.1} parent=11 // pred_check
          %p193 = pneg %p89
        $region14: #{tpu_custom_call.1} parent=11 // pred_check_branch
          %195 = sbr.rel (%p193) target = $region16
        $region15: #{tpu_custom_call.1} parent=11 // pred_region
          _
        $region16: #{tpu_custom_call.1} parent=11 // pred_fallthru
          _
        // Predicated region
        $region17: #{tpu_custom_call.1} parent=11 // pred_check
          %p196 = pneg %p110
        $region18: #{tpu_custom_call.1} parent=11 // pred_check_branch
          %198 = sbr.rel (%p196) target = $region20
        $region19: #{tpu_custom_call.1} parent=11 // pred_region
          _
        $region20: #{tpu_custom_call.1} parent=11 // pred_fallthru
          _
        // Predicated region
        $region21: #{tpu_custom_call.1} parent=11 // pred_check
          %p199 = pneg %p131
        $region22: #{tpu_custom_call.1} parent=11 // pred_check_branch
          %201 = sbr.rel (%p199) target = $region24
        $region23: #{tpu_custom_call.1} parent=11 // pred_region
          _
        $region24: #{tpu_custom_call.1} parent=11 // pred_fallthru
          _
        // Predicated region
        $region25: #{tpu_custom_call.1} parent=11 // pred_check
          %p202 = pneg %p152
        $region26: #{tpu_custom_call.1} parent=11 // pred_check_branch
          %204 = sbr.rel (%p202) target = $region28
        $region27: #{tpu_custom_call.1} parent=11 // pred_region
          _
        $region28: #{tpu_custom_call.1} parent=11 // pred_fallthru
          _
      $region12: #{tpu_custom_call.1} parent=5 // pred_fallthru
        _
      %p205 = scmp.lt.s32.totalorder %s16, 2
      // Predicated region
      $region29: #{tpu_custom_call.1} parent=5 // pred_check
        %p206 = pneg %p205
      $region30: #{tpu_custom_call.1} parent=5 // pred_check_branch
        %208 = sbr.rel (%p206) target = $region32
      $region31: #{tpu_custom_call.1} parent=5 // pred_region
        // Predicated region
        $region33: #{tpu_custom_call.1} parent=31 // pred_check
          %p209 = pneg %p36
        $region34: #{tpu_custom_call.1} parent=31 // pred_check_branch
          %211 = sbr.rel (%p209) target = $region36
        $region35: #{tpu_custom_call.1} parent=31 // pred_region
          %p212 = scmp.lt.s32.totalorder %s16, 1
          %s213 = scalar_select %p212, %s16, 1
          %s214 = scalar_lea.vmem %s0, %s213
        $region36: #{tpu_custom_call.1} parent=31 // pred_fallthru
          _
        // Predicated region
        $region37: #{tpu_custom_call.1} parent=31 // pred_check
          %p215 = pneg %p62
        $region38: #{tpu_custom_call.1} parent=31 // pred_check_branch
          %217 = sbr.rel (%p215) target = $region40
        $region39: #{tpu_custom_call.1} parent=31 // pred_region
          %p218 = scmp.lt.s32.totalorder %s16, 1
          %s219 = scalar_select %p218, %s16, 1
          %s220 = scalar_lea.vmem %s1, %s219
        $region40: #{tpu_custom_call.1} parent=31 // pred_fallthru
          _
      $region32: #{tpu_custom_call.1} parent=5 // pred_fallthru
        _
      %p221 = scmp.le.s32.totalorder 1, %s16
      %p222 = scmp.lt.s32.totalorder %s16, 3
      %p223 = pnand %p221, %p222
      %p224 = pneg %p223
      // Predicated region
      $region41: #{tpu_custom_call.1} parent=5 // pred_check
        _
      $region42: #{tpu_custom_call.1} parent=5 // pred_check_branch
        %226 = sbr.rel (%p223) target = $region44
      $region43: #{tpu_custom_call.1} parent=5 // pred_region
        %s227 = ssub.s32 %s16, 1
        %p228 = scmp.lt.s32.totalorder %s21, 1
        %s229 = scalar_select %p228, %s21, 1
        %s230 = scalar_lea.vmem %s0, %s229
        %p231 = pneg %p42
        %p232 = pneg %p39
        %p233 = scmp.lt.s32.totalorder %s21, 1
        %s234 = scalar_select %p233, %s21, 1
        %s235 = scalar_lea.vmem %s1, %s234
        %p236 = pneg %p68
        %p237 = pneg %p65
        %p238 = pneg %p89
        %p239 = pneg %p86
        %p240 = pneg %p110
        %p241 = pneg %p107
        %p242 = pneg %p131
        %p243 = pneg %p128
        %p244 = pneg %p152
        %p245 = pneg %p149
        %p246 = pneg %p178
        %p247 = pneg %p175
        %s248 = sand.u32 %s165, 1
        %s249 = scalar_lea.sflag [#allocation4], %s248
        %s250 = sand.u32 %s165, 1
        %s251 = scalar_lea.vmem [#allocation3], %s250
        %p252 = scmp.lt.s32.totalorder %s21, 1
        %s253 = scalar_select %p252, %s21, 1
        %s254 = scalar_lea.vmem %s0, %s253
        %p255 = scmp.lt.s32.totalorder %s21, 1
        %s256 = scalar_select %p255, %s21, 1
        %s257 = scalar_lea.vmem %s1, %s256
        %v258 = vld [vmem:[%s2] sm:$0xff]
        %v259 = vld [vmem:[%s2 + $0x8] sm:$0xff]
        %v260 = vld [vmem:[%s2 + $0x10] sm:$0xff]
        %v261 = vld [vmem:[%s2 + $0x18] sm:$0xff]
        %v262 = vld [vmem:[%s254] sm:$0x1]
        %264 = vset.pattern.permute.xlu0 0
        %265 = vperm.xlu0 %264, %v258
        %v266 = vpop.permute.xlu0 %265
        %269 = vset.pattern.permute.xlu0 0
        %270 = vperm.xlu0 %269, %v259
        %v271 = vpop.permute.xlu0 %270
        %274 = vset.pattern.permute.xlu0 0
        %275 = vperm.xlu0 %274, %v260
        %v276 = vpop.permute.xlu0 %275
        %279 = vset.pattern.permute.xlu0 0
        %280 = vperm.xlu0 %279, %v261
        %v281 = vpop.permute.xlu0 %280
        %v284 = vperm.slane %v262, 0
        %v286 = vmul.f32 %v266, %v284
        %v287 = vmul.f32 %v271, %v284
        %v288 = vmul.f32 %v276, %v284
        %v289 = vmul.f32 %v281, %v284
        %v290 = vld [vmem:[%s257] sm:$0x1]
        %291 = vset.pattern.permute.xlu0 1
        %292 = vperm.xlu0 %291, %v258
        %v293 = vpop.permute.xlu0 %292
        %295 = vset.pattern.permute.xlu0 1
        %296 = vperm.xlu0 %295, %v259
        %v297 = vpop.permute.xlu0 %296
        %299 = vset.pattern.permute.xlu0 1
        %300 = vperm.xlu0 %299, %v260
        %v301 = vpop.permute.xlu0 %300
        %303 = vset.pattern.permute.xlu0 1
        %304 = vperm.xlu0 %303, %v261
        %v305 = vpop.permute.xlu0 %304
        %v308 = vperm.slane %v290, 0
        %v310 = vmul.f32 %v293, %v308
        %v311 = vmul.f32 %v297, %v308
        %v312 = vmul.f32 %v301, %v308
        %v313 = vmul.f32 %v305, %v308
        %v314 = vadd.f32 %v286, %v310
        %v315 = vadd.f32 %v287, %v311
        %v316 = vadd.f32 %v288, %v312
        %v317 = vadd.f32 %v289, %v313
        %318 = vset.pattern.permute.xlu0 2
        %319 = vperm.xlu0 %318, %v258
        %v320 = vpop.permute.xlu0 %319
        %322 = vset.pattern.permute.xlu0 2
        %323 = vperm.xlu0 %322, %v259
        %v324 = vpop.permute.xlu0 %323
        %326 = vset.pattern.permute.xlu0 2
        %327 = vperm.xlu0 %326, %v260
        %v328 = vpop.permute.xlu0 %327
        %330 = vset.pattern.permute.xlu0 2
        %331 = vperm.xlu0 %330, %v261
        %v332 = vpop.permute.xlu0 %331
        %v334 = vadd.f32 %v314, %v320
        %v335 = vadd.f32 %v315, %v324
        %v336 = vadd.f32 %v316, %v328
        %v337 = vadd.f32 %v317, %v332
        %v338 = vtanh.pop %v334
        %v339 = vtanh.pop %v335
        %v340 = vtanh.pop %v336
        %v341 = vtanh.pop %v337
        %v342 = vld [vmem:[%s3] sm:$0xff]
        %v343 = vld [vmem:[%s3 + $0x8] sm:$0xff]
        %v344 = vld [vmem:[%s3 + $0x10] sm:$0xff]
        %v345 = vld [vmem:[%s3 + $0x18] sm:$0xff]
        %v346 = vld [vmem:[%s4] sm:$0xff]
        %v347 = vld [vmem:[%s4 + $0x8] sm:$0xff]
        %v348 = vld [vmem:[%s4 + $0x10] sm:$0xff]
        %v349 = vld [vmem:[%s4 + $0x18] sm:$0xff]
        %351 = vset.pattern.permute.xlu0 0
        %352 = vperm.xlu0 %351, %v346
        %v353 = vpop.permute.xlu0 %352
        %356 = vset.pattern.permute.xlu0 0
        %357 = vperm.xlu0 %356, %v347
        %v358 = vpop.permute.xlu0 %357
        %361 = vset.pattern.permute.xlu0 0
        %362 = vperm.xlu0 %361, %v348
        %v363 = vpop.permute.xlu0 %362
        %366 = vset.pattern.permute.xlu0 0
        %367 = vperm.xlu0 %366, %v349
        %v368 = vpop.permute.xlu0 %367
        %vm370 = vcmask 261120
        %v372 = vsel %vm370, %v342, 0
        %v375 = vsel %vm370, %v343, 0
        %v378 = vsel %vm370, %v344, 0
        %v381 = vsel %vm370, %v345, 0
        %383 = vmatpush.msra.mxu0 0.0
        %384 = vmatpush.msra.mxu0 0.0
        %385 = vmatpush.msra.mxu0 0.0
        %386 = vmatpush.msra.mxu0 0.0
        %387 = vmatpush.msra.mxu0 0.0
        %388 = vmatpush.msra.mxu0 0.0
        %389 = vmatpush.msra.mxu0 0.0
        %390 = vmatpush.msra.mxu0 0.0
        %391 = vmatpush.msra.mxu0 0.0
        %392 = vmatpush.msra.mxu0 0.0
        %393 = vmatpush.msra.mxu0 0.0
        %394 = vmatpush.msra.mxu0 0.0
        %395 = vmatpush.msra.mxu0 %v341
        %396 = vmatpush.msra.mxu0 %v340
        %397 = vmatpush.msra.mxu0 %v339
        %398 = vmatpush.msra.mxu0 %v338
        %399 = vmatmul.f32.gmra.mxu0 %v372
        %v400 = vpop.f32.mrf.mxu0
        %v401 = vadd.f32 %v353, %v400
        %402 = vmatmul.f32.gmra.mxu0 %v375
        %v403 = vpop.f32.mrf.mxu0
        %v404 = vadd.f32 %v358, %v403
        %405 = vmatmul.f32.gmra.mxu0 %v378
        %v406 = vpop.f32.mrf.mxu0
        %v407 = vadd.f32 %v363, %v406
        %408 = vmatmul.f32.gmra.mxu0 %v381
        %v409 = vpop.f32.mrf.mxu0
        %v410 = vadd.f32 %v368, %v409
        %411 = vdwg.mxu0
        %v412 = vtanh.pop %v401
        %v413 = vtanh.pop %v404
        %v414 = vtanh.pop %v407
        %v415 = vtanh.pop %v410
        %s416 = scalar_lea.vmem %s3, 32
        %v417 = vld [vmem:[%s416] sm:$0xff]
        %v418 = vld [vmem:[%s416 + $0x8] sm:$0xff]
        %v419 = vld [vmem:[%s416 + $0x10] sm:$0xff]
        %v420 = vld [vmem:[%s416 + $0x18] sm:$0xff]
        %s421 = scalar_lea.vmem %s4, 32
        %v422 = vld [vmem:[%s421] sm:$0xff]
        %v423 = vld [vmem:[%s421 + $0x8] sm:$0xff]
        %v424 = vld [vmem:[%s421 + $0x10] sm:$0xff]
        %v425 = vld [vmem:[%s421 + $0x18] sm:$0xff]
        %427 = vset.pattern.permute.xlu0 0
        %428 = vperm.xlu0 %427, %v422
        %v429 = vpop.permute.xlu0 %428
        %432 = vset.pattern.permute.xlu0 0
        %433 = vperm.xlu0 %432, %v423
        %v434 = vpop.permute.xlu0 %433
        %437 = vset.pattern.permute.xlu0 0
        %438 = vperm.xlu0 %437, %v424
        %v439 = vpop.permute.xlu0 %438
        %442 = vset.pattern.permute.xlu0 0
        %443 = vperm.xlu0 %442, %v425
        %v444 = vpop.permute.xlu0 %443
        %v447 = vsel %vm370, %v417, 0
        %v450 = vsel %vm370, %v418, 0
        %v453 = vsel %vm370, %v419, 0
        %v456 = vsel %vm370, %v420, 0
        %458 = vmatpush.msra.mxu0 0.0
        %459 = vmatpush.msra.mxu0 0.0
        %460 = vmatpush.msra.mxu0 0.0
        %461 = vmatpush.msra.mxu0 0.0
        %462 = vmatpush.msra.mxu0 0.0
        %463 = vmatpush.msra.mxu0 0.0
        %464 = vmatpush.msra.mxu0 0.0
        %465 = vmatpush.msra.mxu0 0.0
        %466 = vmatpush.msra.mxu0 0.0
        %467 = vmatpush.msra.mxu0 0.0
        %468 = vmatpush.msra.mxu0 0.0
        %469 = vmatpush.msra.mxu0 0.0
        %470 = vmatpush.msra.mxu0 %v415
        %471 = vmatpush.msra.mxu0 %v414
        %472 = vmatpush.msra.mxu0 %v413
        %473 = vmatpush.msra.mxu0 %v412
        %474 = vmatmul.f32.gmra.mxu0 %v447
        %v475 = vpop.f32.mrf.mxu0
        %v476 = vadd.f32 %v429, %v475
        %477 = vmatmul.f32.gmra.mxu0 %v450
        %v478 = vpop.f32.mrf.mxu0
        %v479 = vadd.f32 %v434, %v478
        %480 = vmatmul.f32.gmra.mxu0 %v453
        %v481 = vpop.f32.mrf.mxu0
        %v482 = vadd.f32 %v439, %v481
        %483 = vmatmul.f32.gmra.mxu0 %v456
        %v484 = vpop.f32.mrf.mxu0
        %v485 = vadd.f32 %v444, %v484
        %486 = vdwg.mxu0
        %v487 = vtanh.pop %v476
        %v488 = vtanh.pop %v479
        %v489 = vtanh.pop %v482
        %v490 = vtanh.pop %v485
        %491 = vset.pattern.permute.xlu0 3
        %492 = vperm.xlu0 %491, %v258
        %v493 = vpop.permute.xlu0 %492
        %495 = vset.pattern.permute.xlu0 3
        %496 = vperm.xlu0 %495, %v259
        %v497 = vpop.permute.xlu0 %496
        %499 = vset.pattern.permute.xlu0 3
        %500 = vperm.xlu0 %499, %v260
        %v501 = vpop.permute.xlu0 %500
        %503 = vset.pattern.permute.xlu0 3
        %504 = vperm.xlu0 %503, %v261
        %v505 = vpop.permute.xlu0 %504
        %v507 = vmul.f32 %v493, %v487
        %v508 = vmul.f32 %v497, %v488
        %v509 = vmul.f32 %v501, %v489
        %v510 = vmul.f32 %v505, %v490
        %v511 = vadd.f32 %v507, %v508
        %v512 = vadd.f32 %v511, %v509
        %v513 = vadd.f32 %v512, %v510
        %v514 = vrot.slane %v513, 4
        %v515 = vadd.f32 %v513, %v514
        %v516 = vrot.slane %v515, 2
        %v517 = vadd.f32 %v515, %v516
        %v518 = vrot.slane %v517, 1
        %v519 = vadd.f32 %v517, %v518
        %s520 = sld [smem:[#allocation2]]
        %v521 = vstv %s520
        %v522 = vadd.f32 %v519, %v521
        %523 = vst [vmem:[%s251] sm:$0x1] %v522
        %s524 = sand.u32 %s165, 1
        %s525 = scalar_lea.sflag [#allocation4], %s524
        %s526 = sand.u32 %s165, 1
        %s527 = scalar_lea.vmem [#allocation3], %s526
        // Predicated region
        $region45: #{tpu_custom_call.1} parent=43 // pred_check
          %p528 = pneg %p175
        $region46: #{tpu_custom_call.1} parent=43 // pred_check_branch
          %530 = sbr.rel (%p528) target = $region48
        $region47: #{tpu_custom_call.1} parent=43 // pred_region
          %532 = vsyncadd %s525, 0
          %s533 = scalar_lea.hbm %s6, %s21
          %s535 = sshll.u32 %s527, 4
          %s536 = int_to_ptr.vmem [resolvable:$true] %s535
          %s537 = sshll.u32 %s533, 4
          %s538 = int_to_ptr.hbm [resolvable:$true] %s537
          %540 = dma.vmem_to_hbm [thread:$0]  %s536, 16, %s538, %s525
        $region48: #{tpu_custom_call.1} parent=43 // pred_fallthru
          _
      $region44: #{tpu_custom_call.1} parent=5 // pred_fallthru
        _
      %p541 = scmp.le.s32.totalorder 2, %s16
      // Predicated region
      $region49: #{tpu_custom_call.1} parent=5 // pred_check
        %p542 = pneg %p541
      $region50: #{tpu_custom_call.1} parent=5 // pred_check_branch
        %544 = sbr.rel (%p542) target = $region52
      $region51: #{tpu_custom_call.1} parent=5 // pred_region
        %s545 = ssub.s32 %s16, 2
        // Predicated region
        $region53: #{tpu_custom_call.1} parent=51 // pred_check
          %p546 = pneg %p181
        $region54: #{tpu_custom_call.1} parent=51 // pred_check_branch
          %548 = sbr.rel (%p546) target = $region56
        $region55: #{tpu_custom_call.1} parent=51 // pred_region
          %s549 = sand.u32 %s166, 1
          %s550 = scalar_lea.sflag [#allocation4], %s549
          %s551 = sand.u32 %s166, 1
          %s552 = scalar_lea.vmem [#allocation3], %s551
          %554 = dma.done %s550, 16
        $region56: #{tpu_custom_call.1} parent=51 // pred_fallthru
          _
      $region52: #{tpu_custom_call.1} parent=5 // pred_fallthru
        _
    $region6: #{tpu_custom_call.1} parent=1 // loop_footer
      %s20 = sadd.s32 1, %s16
    $region7: #{tpu_custom_call.1} parent=1 // loop_footer_branch
      %15 = sbr.rel target = $region3
    $region8: #{tpu_custom_call.1} parent=1 // loop_exit
      _
    %555 = vsyncpa [#allocation4], 1
    %s556 = scalar_lea.sflag [#allocation4], 1
    %557 = vsyncpa %s556, 1

</llo_original>
